<compile_context>
chip_gen: v6e
topology: v6e:2x2x1
jax: 0.10.0
libtpu: 0.0.40
codegen_flags: <defaults>
</compile_context>

<pallas_src>
import functools

import jax
import jax.numpy as jnp
from jax.experimental import pallas as pl
from jax.experimental.pallas import tpu as pltpu

NEG_SLOPE = 0.3   # LeakyReLU(0.3)
HIDDEN = 20


def _leaky_relu(x):
    return jnp.where(x >= 0, x, NEG_SLOPE * x)


def _round_up(a, m):
    return ((a + m - 1) // m) * m


def policy_mlp_kernel(x_ref, w1_ref, b1_ref, w2_ref, b2_ref, w3_ref, b3_ref,
                      probs_ref):
    """Fused MLP + LeakyReLU + softmax on one [features, TB] batch tile.

    Activations are [features, TB]: features on sublanes, batch on lanes.
    Weights are PyTorch-layout [out, in], so each layer is W @ act on the MXU.
    """
    x = x_ref[...]                                               # [obs_dim, TB]

    # fc1 + LeakyReLU(0.3)
    z1 = jnp.dot(w1_ref[...], x, preferred_element_type=jnp.float32)
    z1 = _leaky_relu(z1 + b1_ref[...])                           # [20, TB]

    # fc2 + LeakyReLU(0.3)
    z2 = jnp.dot(w2_ref[...], z1, preferred_element_type=jnp.float32)
    z2 = _leaky_relu(z2 + b2_ref[...])                           # [20, TB]

    # fc3 + numerically-stable softmax over the action dim (sublane axis)
    logits = jnp.dot(w3_ref[...], z2, preferred_element_type=jnp.float32)
    logits = logits + b3_ref[...]                                # [A, TB]
    m = jnp.max(logits, axis=0, keepdims=True)
    e = jnp.exp(logits - m)
    denom = jnp.sum(e, axis=0, keepdims=True)
    # EUP approximate reciprocal (otherwise-idle slot) + one Newton step to
    # restore ~full f32 accuracy; still cheaper than an exact VPU divide.
    r = pl.reciprocal(denom, approx=True)
    r = r * (2.0 - denom * r)
    probs_ref[...] = e * r                                       # [A, TB]


@functools.partial(jax.jit, static_argnames=("block_b",))
def policy_approximation_forward(x, params, block_b=1024):
    """Returns pi(a|s): the Categorical probability table, shape [B, action_dim].

    block_b: batch tile size (lane axis; multiple of 128).  Sweep per TPU
    generation — ~1024-4096 fits easily on v5e/v6e (128 MiB VMEM), keep
    ~1024-2048 on v7x (64 MiB VMEM) unless vmem_limit_bytes is raised.
    """
    w1, b1, w2, b2, w3, b3 = params       # PyTorch layout: w [out, in], b [out, 1]
    B, obs_dim = x.shape
    action_dim = w3.shape[0]

    # Batch tile lives on the lane axis -> multiple of 128; pad B to a whole
    # number of tiles (padded rows are zeros and are sliced off at the end).
    tb = min(block_b, _round_up(B, 128))
    b_pad = _round_up(B, tb)
    grid = (b_pad // tb,)

    # Transposed, zero-padded input: [obs_dim, B_pad] (batch on lanes).
    x_t = jnp.pad(x, ((0, b_pad - B), (0, 0))).T

    # Weights/biases: constant block index => DMA'd once, resident in VMEM.
    resident = lambda a: pl.BlockSpec(a.shape, lambda i: (0, 0))

    flops = 2 * b_pad * (obs_dim * HIDDEN + HIDDEN * HIDDEN + HIDDEN * action_dim)
    bytes_accessed = 4 * (b_pad * (obs_dim + action_dim)
                          + sum(int(a.size) for a in (w1, b1, w2, b2, w3, b3)))

    probs_t = pl.pallas_call(
        policy_mlp_kernel,
        out_shape=jax.ShapeDtypeStruct((action_dim, b_pad), jnp.float32),
        grid=grid,
        in_specs=[
            pl.BlockSpec((obs_dim, tb), lambda i: (0, i)),   # x tile (pipelined)
            resident(w1), resident(b1),
            resident(w2), resident(b2),
            resident(w3), resident(b3),
        ],
        out_specs=pl.BlockSpec((action_dim, tb), lambda i: (0, i)),
        compiler_params=pltpu.CompilerParams(
            # Batch tiles are independent -> shard across v7x's 2 TensorCores
            # (harmless no-op on single-TC v5e/v6e).
            dimension_semantics=("parallel",)),
        cost_estimate=pl.CostEstimate(
            flops=flops,
            transcendentals=b_pad * (action_dim + 1),
            bytes_accessed=bytes_accessed),
    )(x_t, w1, b1, w2, b2, w3, b3)

    # Un-transpose (layout plumbing only) and drop batch padding.
    return probs_t[:, :B].T


def init_params(key, obs_dim, action_dim, hidden=HIDDEN):
    """nn.Linear-style init U(-1/sqrt(fan_in), 1/sqrt(fan_in)).
    Weights kept in PyTorch [out, in] layout; biases as [out, 1] columns."""
    ks = jax.random.split(key, 6)

    def linear(kw, kb, fan_in, fan_out):
        bound = 1.0 / jnp.sqrt(fan_in)
        w = jax.random.uniform(kw, (fan_out, fan_in), jnp.float32, -bound, bound)
        b = jax.random.uniform(kb, (fan_out, 1), jnp.float32, -bound, bound)
        return w, b

    w1, b1 = linear(ks[0], ks[1], obs_dim, hidden)
    w2, b2 = linear(ks[2], ks[3], hidden, hidden)
    w3, b3 = linear(ks[4], ks[5], hidden, action_dim)
    return (w1, b1, w2, b2, w3, b3)


def _reference(x, params):
    """Pure-JAX reference of the PyTorch forward (probs of the Categorical)."""
    w1, b1, w2, b2, w3, b3 = params
    lr = lambda v: jnp.where(v >= 0, v, NEG_SLOPE * v)
    z1 = lr(x @ w1.T + b1[:, 0])
    z2 = lr(z1 @ w2.T + b2[:, 0])
    logits = z2 @ w3.T + b3[:, 0]
    return jax.nn.softmax(logits, axis=-1)


if __name__ == "__main__":
    key = jax.random.PRNGKey(0)
    kx, kp, kx2 = jax.random.split(key, 3)

    B, obs_dim, action_dim = 8, 16, 4
    x = jax.random.normal(kx, (B, obs_dim), dtype=jnp.float32)
    params = init_params(kp, obs_dim, action_dim)

    probs = jax.block_until_ready(policy_approximation_forward(x, params))
    ref = _reference(x, params)
    assert probs.shape == (B, action_dim)
    assert jnp.allclose(probs, ref, atol=1e-4, rtol=1e-4), "mismatch vs reference"
    assert jnp.allclose(jnp.sum(probs, axis=-1), 1.0, atol=1e-5), "probs not normalized"

    # Exercise the multi-tile path (grid > 1) including the padded tail tile.
    B2 = 300
    x2 = jax.random.normal(kx2, (B2, obs_dim), dtype=jnp.float32)
    probs2 = jax.block_until_ready(
        policy_approximation_forward(x2, params, block_b=128))
    ref2 = _reference(x2, params)
    assert probs2.shape == (B2, action_dim)
    assert jnp.allclose(probs2, ref2, atol=1e-4, rtol=1e-4), "tiled mismatch vs reference"
    assert jnp.allclose(jnp.sum(probs2, axis=-1), 1.0, atol=1e-5), "tiled probs not normalized"

    # TODO(synk): torch.distributions.Categorical (the returned object) has no
    # Pallas equivalent; the kernel emits its `probs` table instead.
    print("KERNEL_OK")
</pallas_src>

<mosaic_0001>
module attributes {stable_mosaic.version = 11 : i64} {
  func.func @policy_mlp_kernel(%arg0: i32, %arg1: memref<16x128xf32, #tpu.memory_space<vmem>>, %arg2: memref<20x16xf32, #tpu.memory_space<vmem>>, %arg3: memref<20x1xf32, #tpu.memory_space<vmem>>, %arg4: memref<20x20xf32, #tpu.memory_space<vmem>>, %arg5: memref<20x1xf32, #tpu.memory_space<vmem>>, %arg6: memref<4x20xf32, #tpu.memory_space<vmem>>, %arg7: memref<4x1xf32, #tpu.memory_space<vmem>>, %arg8: memref<4x128xf32, #tpu.memory_space<vmem>>) attributes {dimension_semantics = [#tpu.dimension_semantics<parallel>], iteration_bounds = array<i64: 1>, scalar_prefetch = 0 : i64, scratch_operands = 0 : i64, tpu.core_type = #tpu.core_type<tc>, window_params = [{transform_indices = @transform_0, window_bounds = array<i64: 16, 128>}, {pipeline_mode = #tpu.pipeline_mode<synchronous>, transform_indices = @transform_1, window_bounds = array<i64: 20, 16>}, {pipeline_mode = #tpu.pipeline_mode<synchronous>, transform_indices = @transform_2, window_bounds = array<i64: 20, 1>}, {pipeline_mode = #tpu.pipeline_mode<synchronous>, transform_indices = @transform_3, window_bounds = array<i64: 20, 20>}, {pipeline_mode = #tpu.pipeline_mode<synchronous>, transform_indices = @transform_4, window_bounds = array<i64: 20, 1>}, {pipeline_mode = #tpu.pipeline_mode<synchronous>, transform_indices = @transform_5, window_bounds = array<i64: 4, 20>}, {pipeline_mode = #tpu.pipeline_mode<synchronous>, transform_indices = @transform_6, window_bounds = array<i64: 4, 1>}, {transform_indices = @transform_7, window_bounds = array<i64: 4, 128>}]} {
    %c0 = arith.constant 0 : index
    %c0_0 = arith.constant 0 : index
    %0 = vector.load %arg1[%c0, %c0_0] : memref<16x128xf32, #tpu.memory_space<vmem>>, vector<16x128xf32>
    %c0_1 = arith.constant 0 : index
    %c0_2 = arith.constant 0 : index
    %1 = vector.load %arg2[%c0_1, %c0_2] : memref<20x16xf32, #tpu.memory_space<vmem>>, vector<20x16xf32>
    %cst = arith.constant dense<0.000000e+00> : vector<20x128xf32>
    %2 = tpu.matmul %1, %0, %cst {dimension_numbers = #tpu.dot_dimension_numbers<[1], [0], [0], [1], [0, 0, 1, 1], [], []>} : vector<20x16xf32>, vector<16x128xf32>, vector<20x128xf32> -> vector<20x128xf32>
    %c0_3 = arith.constant 0 : index
    %c0_4 = arith.constant 0 : index
    %3 = vector.load %arg3[%c0_3, %c0_4] : memref<20x1xf32, #tpu.memory_space<vmem>>, vector<20x1xf32>
    %4 = vector.broadcast %3 : vector<20x1xf32> to vector<20x128xf32>
    %5 = arith.addf %2, %4 : vector<20x128xf32>
    %cst_5 = arith.constant 0.000000e+00 : f32
    %6 = vector.broadcast %cst_5 : f32 to vector<20x128xf32>
    %7 = arith.cmpf oge, %5, %6 : vector<20x128xf32>
    %cst_6 = arith.constant 3.000000e-01 : f32
    %8 = vector.broadcast %cst_6 : f32 to vector<20x128xf32>
    %9 = arith.mulf %8, %5 : vector<20x128xf32>
    %10 = arith.select %7, %5, %9 : vector<20x128xi1>, vector<20x128xf32>
    %c0_7 = arith.constant 0 : index
    %c0_8 = arith.constant 0 : index
    %11 = vector.load %arg4[%c0_7, %c0_8] : memref<20x20xf32, #tpu.memory_space<vmem>>, vector<20x20xf32>
    %cst_9 = arith.constant dense<0.000000e+00> : vector<20x128xf32>
    %12 = tpu.matmul %11, %10, %cst_9 {dimension_numbers = #tpu.dot_dimension_numbers<[1], [0], [0], [1], [0, 0, 1, 1], [], []>} : vector<20x20xf32>, vector<20x128xf32>, vector<20x128xf32> -> vector<20x128xf32>
    %c0_10 = arith.constant 0 : index
    %c0_11 = arith.constant 0 : index
    %13 = vector.load %arg5[%c0_10, %c0_11] : memref<20x1xf32, #tpu.memory_space<vmem>>, vector<20x1xf32>
    %14 = vector.broadcast %13 : vector<20x1xf32> to vector<20x128xf32>
    %15 = arith.addf %12, %14 : vector<20x128xf32>
    %cst_12 = arith.constant 0.000000e+00 : f32
    %16 = vector.broadcast %cst_12 : f32 to vector<20x128xf32>
    %17 = arith.cmpf oge, %15, %16 : vector<20x128xf32>
    %cst_13 = arith.constant 3.000000e-01 : f32
    %18 = vector.broadcast %cst_13 : f32 to vector<20x128xf32>
    %19 = arith.mulf %18, %15 : vector<20x128xf32>
    %20 = arith.select %17, %15, %19 : vector<20x128xi1>, vector<20x128xf32>
    %c0_14 = arith.constant 0 : index
    %c0_15 = arith.constant 0 : index
    %21 = vector.load %arg6[%c0_14, %c0_15] : memref<4x20xf32, #tpu.memory_space<vmem>>, vector<4x20xf32>
    %cst_16 = arith.constant dense<0.000000e+00> : vector<4x128xf32>
    %22 = tpu.matmul %21, %20, %cst_16 {dimension_numbers = #tpu.dot_dimension_numbers<[1], [0], [0], [1], [0, 0, 1, 1], [], []>} : vector<4x20xf32>, vector<20x128xf32>, vector<4x128xf32> -> vector<4x128xf32>
    %c0_17 = arith.constant 0 : index
    %c0_18 = arith.constant 0 : index
    %23 = vector.load %arg7[%c0_17, %c0_18] : memref<4x1xf32, #tpu.memory_space<vmem>>, vector<4x1xf32>
    %24 = vector.broadcast %23 : vector<4x1xf32> to vector<4x128xf32>
    %25 = arith.addf %22, %24 : vector<4x128xf32>
    %cst_19 = arith.constant dense<0xFF800000> : vector<128xf32>
    %26 = vector.multi_reduction <maximumf>, %25, %cst_19 [0] : vector<4x128xf32> to vector<128xf32>
    %27 = vector.shape_cast %26 : vector<128xf32> to vector<1x128xf32>
    %28 = vector.broadcast %27 : vector<1x128xf32> to vector<4x128xf32>
    %29 = arith.subf %25, %28 : vector<4x128xf32>
    %30 = math.exp %29 : vector<4x128xf32>
    %cst_20 = arith.constant dense<0.000000e+00> : vector<128xf32>
    %31 = vector.multi_reduction <add>, %30, %cst_20 [0] : vector<4x128xf32> to vector<128xf32>
    %32 = vector.shape_cast %31 : vector<128xf32> to vector<1x128xf32>
    %33 = tpu.reciprocal %32 {approx = true} : vector<1x128xf32> -> vector<1x128xf32>
    %34 = arith.mulf %32, %33 : vector<1x128xf32>
    %cst_21 = arith.constant 2.000000e+00 : f32
    %35 = vector.broadcast %cst_21 : f32 to vector<1x128xf32>
    %36 = arith.subf %35, %34 : vector<1x128xf32>
    %37 = arith.mulf %33, %36 : vector<1x128xf32>
    %38 = vector.broadcast %37 : vector<1x128xf32> to vector<4x128xf32>
    %39 = arith.mulf %30, %38 : vector<4x128xf32>
    %c0_22 = arith.constant 0 : index
    %c0_23 = arith.constant 0 : index
    %40 = vector.load %arg8[%c0_22, %c0_23] : memref<4x128xf32, #tpu.memory_space<vmem>>, vector<4x128xf32>
    tpu.vector_store %arg8[%c0_22, %c0_23], %39 {strides = array<i32>} : memref<4x128xf32, #tpu.memory_space<vmem>>, vector<4x128xf32>,
    return
  }
  func.func @transform_0(%arg0: i32) -> (i32, i32) {
    %c0_i32 = arith.constant 0 : i32
    %c0_i32_0 = arith.constant 0 : i32
    return %c0_i32, %arg0 : i32, i32
  }
  func.func @transform_1(%arg0: i32) -> (i32, i32) {
    %c0_i32 = arith.constant 0 : i32
    %c0_i32_0 = arith.constant 0 : i32
    %c0_i32_1 = arith.constant 0 : i32
    return %c0_i32, %c0_i32_0 : i32, i32
  }
  func.func @transform_2(%arg0: i32) -> (i32, i32) {
    %c0_i32 = arith.constant 0 : i32
    %c0_i32_0 = arith.constant 0 : i32
    %c0_i32_1 = arith.constant 0 : i32
    return %c0_i32, %c0_i32_0 : i32, i32
  }
  func.func @transform_3(%arg0: i32) -> (i32, i32) {
    %c0_i32 = arith.constant 0 : i32
    %c0_i32_0 = arith.constant 0 : i32
    %c0_i32_1 = arith.constant 0 : i32
    return %c0_i32, %c0_i32_0 : i32, i32
  }
  func.func @transform_4(%arg0: i32) -> (i32, i32) {
    %c0_i32 = arith.constant 0 : i32
    %c0_i32_0 = arith.constant 0 : i32
    %c0_i32_1 = arith.constant 0 : i32
    return %c0_i32, %c0_i32_0 : i32, i32
  }
  func.func @transform_5(%arg0: i32) -> (i32, i32) {
    %c0_i32 = arith.constant 0 : i32
    %c0_i32_0 = arith.constant 0 : i32
    %c0_i32_1 = arith.constant 0 : i32
    return %c0_i32, %c0_i32_0 : i32, i32
  }
  func.func @transform_6(%arg0: i32) -> (i32, i32) {
    %c0_i32 = arith.constant 0 : i32
    %c0_i32_0 = arith.constant 0 : i32
    %c0_i32_1 = arith.constant 0 : i32
    return %c0_i32, %c0_i32_0 : i32, i32
  }
  func.func @transform_7(%arg0: i32) -> (i32, i32) {
    %c0_i32 = arith.constant 0 : i32
    %c0_i32_0 = arith.constant 0 : i32
    return %c0_i32, %arg0 : i32, i32
  }
}

</mosaic_0001>

<llo_original>
// kernel: policy_approximation_forward.1
$region0: #{policy_approximation_forward.1}
  #allocation0 [shape = 'u32[]', space=smem, size = 0x4, offset = 0x4, fixed_abs, tag = 'smem constant byte address 0x4 - core index']
  #allocation1 [shape = 'u32[144,128]{1,0:T(1,128)}', space=vmem, size = 0x12000, scoped, tag = 'internal scratch']
  %s0 = inlined_call_operand.vmem [shape: f32[16,128], index: 0, kind: input, shape index: {}]
  %s1 = inlined_call_operand.vmem [shape: f32[20,16], index: 1, kind: input, shape index: {}]
  %s2 = inlined_call_operand.vmem [shape: f32[20,1], index: 2, kind: input, shape index: {}]
  %s3 = inlined_call_operand.vmem [shape: f32[20,20], index: 3, kind: input, shape index: {}]
  %s4 = inlined_call_operand.vmem [shape: f32[20,1], index: 4, kind: input, shape index: {}]
  %s5 = inlined_call_operand.vmem [shape: f32[4,20], index: 5, kind: input, shape index: {}]
  %s6 = inlined_call_operand.vmem [shape: f32[4,1], index: 6, kind: input, shape index: {}]
  %s7 = inlined_call_operand.vmem [shape: f32[4,128], index: 7, kind: output, shape index: {}]
  %s8 = sld [smem:[#allocation0]]
  $region38: #{policy_approximation_forward.1} parent=0
    _
  %s10 = ssub.s32 1, %s8
  %s11 = scalar_select 0, %s10, %s8
  // Predicated region
  $region2: #{policy_approximation_forward.1} parent=0 // pred_check
    _
  $region3: #{policy_approximation_forward.1} parent=0 // pred_check_branch
    %13 = sbr.rel (0) target = $region5
  $region4: #{policy_approximation_forward.1} parent=0 // pred_region
    _
  $region5: #{policy_approximation_forward.1} parent=0 // pred_fallthru
    _
  // Predicated region
  $region6: #{policy_approximation_forward.1} parent=0 // pred_check
    _
  $region7: #{policy_approximation_forward.1} parent=0 // pred_check_branch
    %15 = sbr.rel (0) target = $region9
  $region8: #{policy_approximation_forward.1} parent=0 // pred_region
    _
  $region9: #{policy_approximation_forward.1} parent=0 // pred_fallthru
    _
  // Predicated region
  $region10: #{policy_approximation_forward.1} parent=0 // pred_check
    _
  $region11: #{policy_approximation_forward.1} parent=0 // pred_check_branch
    %17 = sbr.rel (0) target = $region13
  $region12: #{policy_approximation_forward.1} parent=0 // pred_region
    _
  $region13: #{policy_approximation_forward.1} parent=0 // pred_fallthru
    _
  // Predicated region
  $region14: #{policy_approximation_forward.1} parent=0 // pred_check
    _
  $region15: #{policy_approximation_forward.1} parent=0 // pred_check_branch
    %19 = sbr.rel (0) target = $region17
  $region16: #{policy_approximation_forward.1} parent=0 // pred_region
    _
  $region17: #{policy_approximation_forward.1} parent=0 // pred_fallthru
    _
  // Predicated region
  $region18: #{policy_approximation_forward.1} parent=0 // pred_check
    _
  $region19: #{policy_approximation_forward.1} parent=0 // pred_check_branch
    %21 = sbr.rel (0) target = $region21
  $region20: #{policy_approximation_forward.1} parent=0 // pred_region
    _
  $region21: #{policy_approximation_forward.1} parent=0 // pred_fallthru
    _
  // Predicated region
  $region22: #{policy_approximation_forward.1} parent=0 // pred_check
    _
  $region23: #{policy_approximation_forward.1} parent=0 // pred_check_branch
    %23 = sbr.rel (0) target = $region25
  $region24: #{policy_approximation_forward.1} parent=0 // pred_region
    _
  $region25: #{policy_approximation_forward.1} parent=0 // pred_fallthru
    _
  // Predicated region
  $region26: #{policy_approximation_forward.1} parent=0 // pred_check
    _
  $region27: #{policy_approximation_forward.1} parent=0 // pred_check_branch
    %25 = sbr.rel (0) target = $region29
  $region28: #{policy_approximation_forward.1} parent=0 // pred_region
    _
  $region29: #{policy_approximation_forward.1} parent=0 // pred_fallthru
    _
  %v26 = vld [vmem:[%s0] sm:$0xff]
  %v27 = vld [vmem:[%s0 + $0x8] sm:$0xff]
  %v28 = vld [vmem:[%s1] sm:$0xff]
  %v29 = vld [vmem:[%s1 + $0x8] sm:$0xff]
  %v30 = vld [vmem:[%s1 + $0x10] sm:$0xf]
  %v31 = vld [vmem:[%s2] sm:$0xff]
  %v32 = vld [vmem:[%s2 + $0x8] sm:$0xff]
  %v33 = vld [vmem:[%s2 + $0x10] sm:$0xf]
  %35 = vset.pattern.permute.xlu0 0
  %36 = vperm.xlu0 %35, %v31
  %v37 = vpop.permute.xlu0 %36
  %40 = vset.pattern.permute.xlu0 0
  %41 = vperm.xlu0 %40, %v32
  %v42 = vpop.permute.xlu0 %41
  %45 = vset.pattern.permute.xlu0 0
  %46 = vperm.xlu0 %45, %v33
  %v47 = vpop.permute.xlu0 %46
  %vm49 = vcmask 130048
  %v51 = vsel %vm49, %v28, 0
  %v54 = vsel %vm49, %v29, 0
  %v57 = vsel %vm49, %v30, 0
  %59 = vmatprep.subr.mxu0 0.0
  %60 = vmatpush1.msra.mxu0 0.0
  %61 = vmatprep.subr.mxu0 0.0
  %62 = vmatpush1.msra.mxu0 0.0
  %63 = vmatprep.subr.mxu0 0.0
  %64 = vmatpush1.msra.mxu0 0.0
  %65 = vmatprep.subr.mxu0 0.0
  %66 = vmatpush1.msra.mxu0 0.0
  %67 = vmatprep.subr.mxu0 0.0
  %68 = vmatpush1.msra.mxu0 0.0
  %69 = vmatprep.subr.mxu0 0.0
  %70 = vmatpush1.msra.mxu0 0.0
  %71 = vmatprep.subr.mxu0 0.0
  %72 = vmatpush1.msra.mxu0 0.0
  %73 = vmatprep.subr.mxu0 0.0
  %74 = vmatpush1.msra.mxu0 0.0
  %75 = vmatprep.subr.mxu0 0.0
  %76 = vmatpush1.msra.mxu0 0.0
  %77 = vmatprep.subr.mxu0 0.0
  %78 = vmatpush1.msra.mxu0 0.0
  %79 = vmatprep.subr.mxu0 0.0
  %80 = vmatpush1.msra.mxu0 0.0
  %81 = vmatprep.subr.mxu0 0.0
  %82 = vmatpush1.msra.mxu0 0.0
  %83 = vmatprep.subr.mxu0 0.0
  %84 = vmatpush1.msra.mxu0 0.0
  %85 = vmatprep.subr.mxu0 0.0
  %86 = vmatpush1.msra.mxu0 0.0
  %87 = vmatprep.subr.mxu0 0.0
  %88 = vmatpush1.msra.mxu0 %v27
  %89 = vmatprep.subr.mxu0 0.0
  %90 = vmatpush1.msra.mxu0 %v26
  %91 = vmatprep.subr.mxu0 0.0
  %92 = vmatpush2.msra.mxu0 0.0
  %93 = vmatprep.subr.mxu0 0.0
  %94 = vmatpush2.msra.mxu0 0.0
  %95 = vmatprep.subr.mxu0 0.0
  %96 = vmatpush2.msra.mxu0 0.0
  %97 = vmatprep.subr.mxu0 0.0
  %98 = vmatpush2.msra.mxu0 0.0
  %99 = vmatprep.subr.mxu0 0.0
  %100 = vmatpush2.msra.mxu0 0.0
  %101 = vmatprep.subr.mxu0 0.0
  %102 = vmatpush2.msra.mxu0 0.0
  %103 = vmatprep.subr.mxu0 0.0
  %104 = vmatpush2.msra.mxu0 0.0
  %105 = vmatprep.subr.mxu0 0.0
  %106 = vmatpush2.msra.mxu0 0.0
  %107 = vmatprep.subr.mxu0 0.0
  %108 = vmatpush2.msra.mxu0 0.0
  %109 = vmatprep.subr.mxu0 0.0
  %110 = vmatpush2.msra.mxu0 0.0
  %111 = vmatprep.subr.mxu0 0.0
  %112 = vmatpush2.msra.mxu0 0.0
  %113 = vmatprep.subr.mxu0 0.0
  %114 = vmatpush2.msra.mxu0 0.0
  %115 = vmatprep.subr.mxu0 0.0
  %116 = vmatpush2.msra.mxu0 0.0
  %117 = vmatprep.subr.mxu0 0.0
  %118 = vmatpush2.msra.mxu0 0.0
  %119 = vmatprep.subr.mxu0 0.0
  %120 = vmatpush2.msra.mxu0 0.0
  %121 = vmatprep.subr.mxu0 0.0
  %122 = vmatpush2.msra.mxu0 0.0
  %123 = vmatprep.mubr.f32.mxu0 0.0
  %124 = vmatmul.mubr.f32.gmra.mxu0 %v51
  %v125 = vpop.f32.mrf.mxu0
  %v126 = vadd.f32 %v37, %v125
  %v127 = vpop.f32.mrf.mxu0
  %128 = vmatprep.mubr.f32.mxu0 0.0
  %129 = vmatmul.mubr.f32.gmra.mxu0 %v54
  %v130 = vpop.f32.mrf.mxu0
  %v131 = vadd.f32 %v42, %v130
  %v132 = vpop.f32.mrf.mxu0
  %133 = vmatprep.mubr.f32.mxu0 0.0
  %134 = vmatmul.mubr.f32.gmra.mxu0 %v57
  %v135 = vpop.f32.mrf.mxu0
  %v136 = vadd.f32 %v47, %v135
  %v137 = vpop.f32.mrf.mxu0
  %138 = vdwg.mxu0
  %vm139 = vcmp.ge.f32.partialorder %v126, 0.0
  %vm140 = vcmp.ge.f32.partialorder %v131, 0.0
  %vm141 = vcmp.ge.f32.partialorder %v136, 0.0
  %v142 = vmul.f32 %v126, 0.3
  %v143 = vmul.f32 %v131, 0.3
  %v144 = vmul.f32 %v136, 0.3
  %v145 = vsel %vm139, %v126, %v142
  %v146 = vsel %vm140, %v131, %v143
  %v147 = vsel %vm141, %v136, %v144
  %v148 = vld [vmem:[%s3] sm:$0xff]
  %v149 = vld [vmem:[%s3 + $0x8] sm:$0xff]
  %v150 = vld [vmem:[%s3 + $0x10] sm:$0xf]
  %v151 = vld [vmem:[%s4] sm:$0xff]
  %v152 = vld [vmem:[%s4 + $0x8] sm:$0xff]
  %v153 = vld [vmem:[%s4 + $0x10] sm:$0xf]
  %155 = vset.pattern.permute.xlu0 0
  %156 = vperm.xlu0 %155, %v151
  %v157 = vpop.permute.xlu0 %156
  %160 = vset.pattern.permute.xlu0 0
  %161 = vperm.xlu0 %160, %v152
  %v162 = vpop.permute.xlu0 %161
  %165 = vset.pattern.permute.xlu0 0
  %166 = vperm.xlu0 %165, %v153
  %v167 = vpop.permute.xlu0 %166
  %vm169 = vcmask 162816
  %v171 = vsel %vm169, %v148, 0
  %v174 = vsel %vm169, %v149, 0
  %v177 = vsel %vm169, %v150, 0
  %vm179 = vcmask 1043456
  %v181 = vsel %vm179, %v147, 0
  %183 = vmatprep.subr.mxu0 0.0
  %184 = vmatpush1.msra.mxu0 0.0
  %185 = vmatprep.subr.mxu0 0.0
  %186 = vmatpush1.msra.mxu0 0.0
  %187 = vmatprep.subr.mxu0 0.0
  %188 = vmatpush1.msra.mxu0 0.0
  %189 = vmatprep.subr.mxu0 0.0
  %190 = vmatpush1.msra.mxu0 0.0
  %191 = vmatprep.subr.mxu0 0.0
  %192 = vmatpush1.msra.mxu0 0.0
  %193 = vmatprep.subr.mxu0 0.0
  %194 = vmatpush1.msra.mxu0 0.0
  %195 = vmatprep.subr.mxu0 0.0
  %196 = vmatpush1.msra.mxu0 0.0
  %197 = vmatprep.subr.mxu0 0.0
  %198 = vmatpush1.msra.mxu0 0.0
  %199 = vmatprep.subr.mxu0 0.0
  %200 = vmatpush1.msra.mxu0 0.0
  %201 = vmatprep.subr.mxu0 0.0
  %202 = vmatpush1.msra.mxu0 0.0
  %203 = vmatprep.subr.mxu0 0.0
  %204 = vmatpush1.msra.mxu0 0.0
  %205 = vmatprep.subr.mxu0 0.0
  %206 = vmatpush1.msra.mxu0 0.0
  %207 = vmatprep.subr.mxu0 0.0
  %208 = vmatpush1.msra.mxu0 0.0
  %209 = vmatprep.subr.mxu0 0.0
  %210 = vmatpush1.msra.mxu0 %v181
  %211 = vmatprep.subr.mxu0 0.0
  %212 = vmatpush1.msra.mxu0 %v146
  %213 = vmatprep.subr.mxu0 0.0
  %214 = vmatpush1.msra.mxu0 %v145
  %215 = vmatprep.subr.mxu0 0.0
  %216 = vmatpush2.msra.mxu0 0.0
  %217 = vmatprep.subr.mxu0 0.0
  %218 = vmatpush2.msra.mxu0 0.0
  %219 = vmatprep.subr.mxu0 0.0
  %220 = vmatpush2.msra.mxu0 0.0
  %221 = vmatprep.subr.mxu0 0.0
  %222 = vmatpush2.msra.mxu0 0.0
  %223 = vmatprep.subr.mxu0 0.0
  %224 = vmatpush2.msra.mxu0 0.0
  %225 = vmatprep.subr.mxu0 0.0
  %226 = vmatpush2.msra.mxu0 0.0
  %227 = vmatprep.subr.mxu0 0.0
  %228 = vmatpush2.msra.mxu0 0.0
  %229 = vmatprep.subr.mxu0 0.0
  %230 = vmatpush2.msra.mxu0 0.0
  %231 = vmatprep.subr.mxu0 0.0
  %232 = vmatpush2.msra.mxu0 0.0
  %233 = vmatprep.subr.mxu0 0.0
  %234 = vmatpush2.msra.mxu0 0.0
  %235 = vmatprep.subr.mxu0 0.0
  %236 = vmatpush2.msra.mxu0 0.0
  %237 = vmatprep.subr.mxu0 0.0
  %238 = vmatpush2.msra.mxu0 0.0
  %239 = vmatprep.subr.mxu0 0.0
  %240 = vmatpush2.msra.mxu0 0.0
  %241 = vmatprep.subr.mxu0 0.0
  %242 = vmatpush2.msra.mxu0 0.0
  %243 = vmatprep.subr.mxu0 0.0
  %244 = vmatpush2.msra.mxu0 0.0
  %245 = vmatprep.subr.mxu0 0.0
  %246 = vmatpush2.msra.mxu0 0.0
  %247 = vmatprep.mubr.f32.mxu0 0.0
  %248 = vmatmul.mubr.f32.gmra.mxu0 %v171
  %v249 = vpop.f32.mrf.mxu0
  %v250 = vadd.f32 %v157, %v249
  %v251 = vpop.f32.mrf.mxu0
  %252 = vmatprep.mubr.f32.mxu0 0.0
  %253 = vmatmul.mubr.f32.gmra.mxu0 %v174
  %v254 = vpop.f32.mrf.mxu0
  %v255 = vadd.f32 %v162, %v254
  %v256 = vpop.f32.mrf.mxu0
  %257 = vmatprep.mubr.f32.mxu0 0.0
  %258 = vmatmul.mubr.f32.gmra.mxu0 %v177
  %v259 = vpop.f32.mrf.mxu0
  %v260 = vadd.f32 %v167, %v259
  %v261 = vpop.f32.mrf.mxu0
  %262 = vdwg.mxu0
  %vm263 = vcmp.ge.f32.partialorder %v250, 0.0
  %vm264 = vcmp.ge.f32.partialorder %v255, 0.0
  %vm265 = vcmp.ge.f32.partialorder %v260, 0.0
  %v266 = vmul.f32 %v250, 0.3
  %v267 = vmul.f32 %v255, 0.3
  %v268 = vmul.f32 %v260, 0.3
  %v269 = vsel %vm263, %v250, %v266
  %v270 = vsel %vm264, %v255, %v267
  %v271 = vsel %vm265, %v260, %v268
  %v272 = vld [vmem:[%s5] sm:$0xf]
  %v273 = vld [vmem:[%s6] sm:$0xf]
  %275 = vset.pattern.permute.xlu0 0
  %276 = vperm.xlu0 %275, %v273
  %v277 = vpop.permute.xlu0 %276
  %v280 = vsel %vm169, %v272, 0
  %v283 = vsel %vm179, %v271, 0
  %285 = vmatprep.subr.mxu0 0.0
  %286 = vmatpush1.msra.mxu0 0.0
  %287 = vmatprep.subr.mxu0 0.0
  %288 = vmatpush1.msra.mxu0 0.0
  %289 = vmatprep.subr.mxu0 0.0
  %290 = vmatpush1.msra.mxu0 0.0
  %291 = vmatprep.subr.mxu0 0.0
  %292 = vmatpush1.msra.mxu0 0.0
  %293 = vmatprep.subr.mxu0 0.0
  %294 = vmatpush1.msra.mxu0 0.0
  %295 = vmatprep.subr.mxu0 0.0
  %296 = vmatpush1.msra.mxu0 0.0
  %297 = vmatprep.subr.mxu0 0.0
  %298 = vmatpush1.msra.mxu0 0.0
  %299 = vmatprep.subr.mxu0 0.0
  %300 = vmatpush1.msra.mxu0 0.0
  %301 = vmatprep.subr.mxu0 0.0
  %302 = vmatpush1.msra.mxu0 0.0
  %303 = vmatprep.subr.mxu0 0.0
  %304 = vmatpush1.msra.mxu0 0.0
  %305 = vmatprep.subr.mxu0 0.0
  %306 = vmatpush1.msra.mxu0 0.0
  %307 = vmatprep.subr.mxu0 0.0
  %308 = vmatpush1.msra.mxu0 0.0
  %309 = vmatprep.subr.mxu0 0.0
  %310 = vmatpush1.msra.mxu0 0.0
  %311 = vmatprep.subr.mxu0 0.0
  %312 = vmatpush1.msra.mxu0 %v283
  %313 = vmatprep.subr.mxu0 0.0
  %314 = vmatpush1.msra.mxu0 %v270
  %315 = vmatprep.subr.mxu0 0.0
  %316 = vmatpush1.msra.mxu0 %v269
  %317 = vmatprep.subr.mxu0 0.0
  %318 = vmatpush2.msra.mxu0 0.0
  %319 = vmatprep.subr.mxu0 0.0
  %320 = vmatpush2.msra.mxu0 0.0
  %321 = vmatprep.subr.mxu0 0.0
  %322 = vmatpush2.msra.mxu0 0.0
  %323 = vmatprep.subr.mxu0 0.0
  %324 = vmatpush2.msra.mxu0 0.0
  %325 = vmatprep.subr.mxu0 0.0
  %326 = vmatpush2.msra.mxu0 0.0
  %327 = vmatprep.subr.mxu0 0.0
  %328 = vmatpush2.msra.mxu0 0.0
  %329 = vmatprep.subr.mxu0 0.0
  %330 = vmatpush2.msra.mxu0 0.0
  %331 = vmatprep.subr.mxu0 0.0
  %332 = vmatpush2.msra.mxu0 0.0
  %333 = vmatprep.subr.mxu0 0.0
  %334 = vmatpush2.msra.mxu0 0.0
  %335 = vmatprep.subr.mxu0 0.0
  %336 = vmatpush2.msra.mxu0 0.0
  %337 = vmatprep.subr.mxu0 0.0
  %338 = vmatpush2.msra.mxu0 0.0
  %339 = vmatprep.subr.mxu0 0.0
  %340 = vmatpush2.msra.mxu0 0.0
  %341 = vmatprep.subr.mxu0 0.0
  %342 = vmatpush2.msra.mxu0 0.0
  %343 = vmatprep.subr.mxu0 0.0
  %344 = vmatpush2.msra.mxu0 0.0
  %345 = vmatprep.subr.mxu0 0.0
  %346 = vmatpush2.msra.mxu0 0.0
  %347 = vmatprep.subr.mxu0 0.0
  %348 = vmatpush2.msra.mxu0 0.0
  %349 = vmatprep.mubr.f32.mxu0 0.0
  %350 = vmatmul.mubr.f32.gmra.mxu0 %v280
  %v351 = vpop.f32.mrf.mxu0
  %v352 = vadd.f32 %v277, %v351
  %v353 = vpop.f32.mrf.mxu0
  %354 = vdwg.mxu0
  %v355 = vsel %vm179, %v352, -inf
  %v356 = vrot.slane %v355, 4
  %v357 = vmax.f32 %v355, %v356
  %v358 = vrot.slane %v357, 2
  %v359 = vmax.f32 %v357, %v358
  %v360 = vrot.slane %v359, 1
  %v361 = vmax.f32 %v359, %v360
  %v362 = vsub.f32 %v352, %v361
  %v363 = vmul.f32 %v362, 1.442695
  %v364 = vpow.pop %v363
  %v365 = vsel %vm179, %v364, 0.0
  %v366 = vrot.slane %v365, 4
  %v367 = vadd.f32 %v365, %v366
  %v368 = vrot.slane %v367, 2
  %v369 = vadd.f32 %v367, %v368
  %v370 = vrot.slane %v369, 1
  %v371 = vadd.f32 %v369, %v370
  %v372 = vrcp.pop %v371
  %v373 = vmul.f32 %v371, %v372
  %v374 = vsub.f32 2.0, %v373
  %v375 = vmul.f32 %v372, %v374
  %v376 = vmul.f32 %v364, %v375
  %377 = vst [vmem:[%s7] sm:$0xf] %v376
  // Predicated region
  $region30: #{policy_approximation_forward.1} parent=0 // pred_check
    _
  $region31: #{policy_approximation_forward.1} parent=0 // pred_check_branch
    %379 = sbr.rel (0) target = $region33
  $region32: #{policy_approximation_forward.1} parent=0 // pred_region
    _
  $region33: #{policy_approximation_forward.1} parent=0 // pred_fallthru
    _
  // Predicated region
  $region34: #{policy_approximation_forward.1} parent=0 // pred_check
    _
  $region35: #{policy_approximation_forward.1} parent=0 // pred_check_branch
    %381 = sbr.rel (0) target = $region37
  $region36: #{policy_approximation_forward.1} parent=0 // pred_region
    _
  $region37: #{policy_approximation_forward.1} parent=0 // pred_fallthru
    _

</llo_original>
